<compile_context>
chip_gen: v5e
topology: v5e:2x2
jax: 0.10.0
libtpu: 0.0.40
codegen_flags: <defaults>
</compile_context>

<pallas_src>
import numpy as np
import jax
import jax.numpy as jnp
from jax import lax
from jax.experimental import pallas as pl
from jax.experimental.pallas import tpu as pltpu


def _round_up(x: int, m: int) -> int:
    return (x + m - 1) // m * m


def _tc_loss_kernel(ib_ref, jb_ref, gap_ref,             # scalar prefetch (SMEM)
                    ei_ref, ej_ref, mcol_ref, mrow_ref,  # VMEM inputs
                    loss_ref, cnt_ref):                  # (1, 8, 128) partial outputs
    step = pl.program_id(0)
    ib = ib_ref[step]          # row-block index of this pair tile
    jb = jb_ref[step]          # col-block index of this pair tile
    max_gap = gap_ref[0]

    ei = ei_ref[...]           # (T, D), original dtype (bf16 stays bf16)
    ej = ej_ref[...]           # (T, D)
    T, D = ei.shape

    # Gram tile on the MXU, f32 accumulation: g[a, b] = <e_i[a], e_j[b]>.
    g = lax.dot_general(ei, ej, (((1,), (1,)), ((), ())),
                        preferred_element_type=jnp.float32)          # (T, T)

    # Squared norms straight from the embeddings.
    eif = ei.astype(jnp.float32)
    ejf = ej.astype(jnp.float32)
    n2_i = jnp.sum(eif * eif, axis=1, keepdims=True)                 # (T, 1)
    # Row-form |e_j|^2 without a sublane->lane transpose: ones @ (ej*ej)^T on
    # the MXU gives it directly in lane-major layout (keeps the XLU free).
    n2_j = lax.dot_general(jnp.ones((8, D), jnp.float32), ejf * ejf,
                           (((1,), (1,)), ((), ())),
                           preferred_element_type=jnp.float32)[0:1, :]  # (1, T)

    mse = jnp.maximum(n2_i + n2_j - 2.0 * g, 0.0) * jnp.float32(1.0 / D)

    frm_i = mcol_ref[:, 0:1]   # (T, 1) int32
    vid_i = mcol_ref[:, 1:2]   # (T, 1) int32
    frm_j = mrow_ref[0:1, :]   # (1, T) int32
    vid_j = mrow_ref[1:2, :]   # (1, T) int32

    fd = jnp.abs(frm_i - frm_j)                       # (T, T) int32
    same_video = vid_i == vid_j                       # (T, T) bool

    # Off-diagonal tiles (jb > ib) are entirely "upper"; the per-element i < j
    # comparison only matters on diagonal tiles.
    ii = lax.broadcasted_iota(jnp.int32, (T, T), 0)
    jj = lax.broadcasted_iota(jnp.int32, (T, T), 1)
    upper = jnp.logical_or(jb > ib, jj > ii)

    valid_f = (upper & same_video & (fd <= max_gap)).astype(jnp.float32)

    # 1 / (1 + frame_diff) on the EUP slot.
    pair_w = pl.reciprocal(1.0 + fd.astype(jnp.float32), approx=True)
    contrib = valid_f * (pair_w * mse)

    # Per-step lane-dense partial sums (splat of the reduced scalar): the grid
    # axis carries no cross-step state, so it can be megacore-parallel.
    loss_ref[...] = jnp.broadcast_to(jnp.sum(contrib), loss_ref.shape)
    cnt_ref[...] = jnp.broadcast_to(jnp.sum(valid_f), cnt_ref.shape)


def temporal_consistency_loss(embeddings, frame_numbers, video_ids,
                              weight: float = 0.1, max_frames_gap: int = 5,
                              tile: int = 128):
    """JAX/Pallas equivalent of TemporalConsistencyLoss.forward."""
    B, D = embeddings.shape
    frm = jnp.asarray(frame_numbers, dtype=jnp.int32).reshape(B)
    vid = jnp.asarray(video_ids, dtype=jnp.int32).reshape(B)

    # Pair-tile size: 128 maps onto every TPU generation's MXU (pass tile=256
    # on v6e/v7x for full 256x256 MXU tiles).  Small batches collapse to one
    # tile padded up to a sublane multiple.
    tile = max(128, _round_up(int(tile), 128))
    if B <= tile:
        tsz = _round_up(max(B, 1), 8)    # single-tile fast path
    else:
        tsz = tile                       # 128-multiple so (2, tsz) meta blocks are legal
    Bp = _round_up(B, tsz)
    nb = Bp // tsz
    pad = Bp - B

    emb = embeddings                     # keep dtype; MXU accumulates in f32
    if pad:
        emb = jnp.pad(emb, ((0, pad), (0, 0)))
        frm = jnp.pad(frm, (0, pad))
        # Unique sentinel video ids so padded rows never form a valid pair.
        vid = jnp.concatenate(
            [vid, jnp.max(vid) + 1 + jnp.arange(pad, dtype=jnp.int32)])

    meta_col = jnp.stack([frm, vid], axis=1)      # (Bp, 2) int32, i-side
    meta_row = jnp.stack([frm, vid], axis=0)      # (2, Bp) int32, j-side

    # Upper-triangle block list, row-major so the e_i tile stays resident
    # across consecutive grid steps (Pallas skips re-DMA of unchanged blocks).
    pairs = [(i, j) for i in range(nb) for j in range(i, nb)]
    npairs = len(pairs)
    ib_arr = jnp.asarray(np.asarray([p[0] for p in pairs], dtype=np.int32))
    jb_arr = jnp.asarray(np.asarray([p[1] for p in pairs], dtype=np.int32))
    gap_arr = jnp.asarray([max_frames_gap], dtype=jnp.int32)

    grid_spec = pltpu.PrefetchScalarGridSpec(
        num_scalar_prefetch=3,
        grid=(npairs,),
        in_specs=[
            pl.BlockSpec((tsz, D), lambda n, ib, jb, gap: (ib[n], 0)),   # e_i
            pl.BlockSpec((tsz, D), lambda n, ib, jb, gap: (jb[n], 0)),   # e_j
            pl.BlockSpec((tsz, 2), lambda n, ib, jb, gap: (ib[n], 0)),   # meta_i
            pl.BlockSpec((2, tsz), lambda n, ib, jb, gap: (0, jb[n])),   # meta_j
        ],
        out_specs=(
            pl.BlockSpec((1, 8, 128), lambda n, ib, jb, gap: (n, 0, 0)),  # loss parts
            pl.BlockSpec((1, 8, 128), lambda n, ib, jb, gap: (n, 0, 0)),  # count parts
        ),
    )

    # TODO(synk): for very large D, add a K (embedding-dim) grid axis with a
    # (tsz, tsz) f32 VMEM Gram accumulator to stay inside v7x's 64 MiB VMEM.
    out_loss, out_cnt = pl.pallas_call(
        _tc_loss_kernel,
        grid_spec=grid_spec,
        out_shape=(jax.ShapeDtypeStruct((npairs, 8, 128), jnp.float32),
                   jax.ShapeDtypeStruct((npairs, 8, 128), jnp.float32)),
        compiler_params=pltpu.CompilerParams(
            dimension_semantics=("parallel",)),
    )(ib_arr, jb_arr, gap_arr, emb, emb, meta_col, meta_row)

    # Tiny final reduction over pair tiles (each tile holds a splatted scalar).
    loss_sum = jnp.sum(out_loss[:, 0, 0])
    count = jnp.sum(out_cnt[:, 0, 0])
    # Final scaling outside the kernel: weight changes never trigger recompiles.
    return jnp.float32(weight) * loss_sum / jnp.maximum(count, jnp.float32(1.0))


def _reference(embeddings, frame_numbers, video_ids,
               weight=0.1, max_frames_gap=5):
    """Pure-numpy replica of the PyTorch double loop (ground truth)."""
    e = np.asarray(embeddings, np.float32)
    f = np.asarray(frame_numbers)
    v = np.asarray(video_ids)
    loss, count = 0.0, 0
    B = e.shape[0]
    for i in range(B):
        for j in range(i + 1, B):
            if v[i] != v[j]:
                continue
            fd = abs(int(f[i]) - int(f[j]))
            if fd <= max_frames_gap:
                w = 1.0 / (1.0 + fd)
                loss += w * float(np.mean((e[i] - e[j]) ** 2))
                count += 1
    return weight * loss / max(count, 1)


if __name__ == "__main__":
    # --- test 1: small batch (single pair tile) ---------------------------
    key = jax.random.PRNGKey(0)
    B, D = 8, 32
    embeddings = jax.random.normal(key, (B, D), dtype=jnp.float32)
    frame_numbers = jnp.array([0, 2, 7, 9, 1, 3, 4, 20], dtype=jnp.int32)
    video_ids = jnp.array([0, 0, 0, 0, 1, 1, 1, 1], dtype=jnp.int32)

    out = temporal_consistency_loss(embeddings, frame_numbers, video_ids,
                                    weight=0.1, max_frames_gap=5)
    out = jax.block_until_ready(out)
    ref = _reference(np.asarray(embeddings), np.asarray(frame_numbers),
                     np.asarray(video_ids), weight=0.1, max_frames_gap=5)
    assert abs(float(out) - float(ref)) < 2e-3 * max(1.0, abs(float(ref))), (
        float(out), float(ref))

    # --- test 2: multi-tile path (grid of 3 upper-triangle tiles + padding) -
    B2, D2 = 160, 32
    emb2 = jax.random.normal(jax.random.PRNGKey(1), (B2, D2), dtype=jnp.float32)
    frames2 = jnp.arange(B2, dtype=jnp.int32) % 11
    vids2 = jnp.arange(B2, dtype=jnp.int32) // 10

    out2 = temporal_consistency_loss(emb2, frames2, vids2,
                                     weight=0.1, max_frames_gap=5)
    out2 = jax.block_until_ready(out2)
    ref2 = _reference(np.asarray(emb2), np.asarray(frames2), np.asarray(vids2),
                      weight=0.1, max_frames_gap=5)
    assert abs(float(out2) - float(ref2)) < 2e-3 * max(1.0, abs(float(ref2))), (
        float(out2), float(ref2))

    print("KERNEL_OK")
</pallas_src>

<mosaic_0001>
module attributes {stable_mosaic.version = 11 : i64} {
  func.func @_tc_loss_kernel(%arg0: i32, %arg1: memref<1xi32, #tpu.memory_space<smem>>, %arg2: memref<1xi32, #tpu.memory_space<smem>>, %arg3: memref<1xi32, #tpu.memory_space<smem>>, %arg4: memref<8x32xf32, #tpu.memory_space<vmem>>, %arg5: memref<8x32xf32, #tpu.memory_space<vmem>>, %arg6: memref<8x2xi32, #tpu.memory_space<vmem>>, %arg7: memref<2x8xi32, #tpu.memory_space<vmem>>, %arg8: memref<1x8x128xf32, #tpu.memory_space<vmem>>, %arg9: memref<1x8x128xf32, #tpu.memory_space<vmem>>) attributes {dimension_semantics = [#tpu.dimension_semantics<parallel>], iteration_bounds = array<i64: 1>, scalar_prefetch = 3 : i64, scratch_operands = 0 : i64, tpu.core_type = #tpu.core_type<tc>, window_params = [{transform_indices = @transform_0, window_bounds = array<i64: 8, 32>}, {transform_indices = @transform_1, window_bounds = array<i64: 8, 32>}, {transform_indices = @transform_2, window_bounds = array<i64: 8, 2>}, {transform_indices = @transform_3, window_bounds = array<i64: 2, 8>}, {transform_indices = @transform_4, window_bounds = array<i64: 1, 8, 128>}, {transform_indices = @transform_5, window_bounds = array<i64: 1, 8, 128>}]} {
    %0 = arith.index_cast %arg0 : i32 to index
    %1 = memref.load %arg1[%0] : memref<1xi32, #tpu.memory_space<smem>>
    %2 = arith.index_cast %arg0 : i32 to index
    %3 = memref.load %arg2[%2] : memref<1xi32, #tpu.memory_space<smem>>
    %c0 = arith.constant 0 : index
    %4 = memref.load %arg3[%c0] : memref<1xi32, #tpu.memory_space<smem>>
    %c0_0 = arith.constant 0 : index
    %c0_1 = arith.constant 0 : index
    %5 = vector.load %arg4[%c0_0, %c0_1] : memref<8x32xf32, #tpu.memory_space<vmem>>, vector<8x32xf32>
    %c0_2 = arith.constant 0 : index
    %c0_3 = arith.constant 0 : index
    %6 = vector.load %arg5[%c0_2, %c0_3] : memref<8x32xf32, #tpu.memory_space<vmem>>, vector<8x32xf32>
    %cst = arith.constant dense<0.000000e+00> : vector<8x8xf32>
    %7 = tpu.matmul %5, %6, %cst {dimension_numbers = #tpu.dot_dimension_numbers<[1], [1], [0], [0], [0, 0, 1, 0], [], []>} : vector<8x32xf32>, vector<8x32xf32>, vector<8x8xf32> -> vector<8x8xf32>
    %8 = arith.mulf %5, %5 : vector<8x32xf32>
    %cst_4 = arith.constant dense<0.000000e+00> : vector<8xf32>
    %9 = vector.multi_reduction <add>, %8, %cst_4 [1] : vector<8x32xf32> to vector<8xf32>
    %10 = vector.shape_cast %9 : vector<8xf32> to vector<8x1xf32>
    %cst_5 = arith.constant 1.000000e+00 : f32
    %11 = vector.broadcast %cst_5 : f32 to vector<8x32xf32>
    %12 = arith.mulf %6, %6 : vector<8x32xf32>
    %cst_6 = arith.constant dense<0.000000e+00> : vector<8x8xf32>
    %13 = tpu.matmul %11, %12, %cst_6 {dimension_numbers = #tpu.dot_dimension_numbers<[1], [1], [0], [0], [0, 0, 1, 0], [], []>} : vector<8x32xf32>, vector<8x32xf32>, vector<8x8xf32> -> vector<8x8xf32>
    %14 = vector.extract_strided_slice %13 {offsets = [0, 0], sizes = [1, 8], strides = [1, 1]} : vector<8x8xf32> to vector<1x8xf32>
    %15 = vector.broadcast %10 : vector<8x1xf32> to vector<8x8xf32>
    %16 = vector.broadcast %14 : vector<1x8xf32> to vector<8x8xf32>
    %17 = arith.addf %15, %16 : vector<8x8xf32>
    %cst_7 = arith.constant 2.000000e+00 : f32
    %18 = vector.broadcast %cst_7 : f32 to vector<8x8xf32>
    %19 = arith.mulf %18, %7 : vector<8x8xf32>
    %20 = arith.subf %17, %19 : vector<8x8xf32>
    %cst_8 = arith.constant 0.000000e+00 : f32
    %21 = vector.broadcast %cst_8 : f32 to vector<8x8xf32>
    %22 = arith.maximumf %20, %21 : vector<8x8xf32>
    %cst_9 = arith.constant 3.125000e-02 : f32
    %23 = vector.broadcast %cst_9 : f32 to vector<8x8xf32>
    %24 = arith.mulf %22, %23 : vector<8x8xf32>
    %c0_10 = arith.constant 0 : index
    %c0_11 = arith.constant 0 : index
    %25 = vector.load %arg6[%c0_10, %c0_11] : memref<8x2xi32, #tpu.memory_space<vmem>>, vector<8x1xi32>
    %c0_12 = arith.constant 0 : index
    %c1 = arith.constant 1 : index
    %26 = vector.load %arg6[%c0_12, %c1] : memref<8x2xi32, #tpu.memory_space<vmem>>, vector<8x1xi32>
    %c0_13 = arith.constant 0 : index
    %c0_14 = arith.constant 0 : index
    %27 = vector.load %arg7[%c0_13, %c0_14] : memref<2x8xi32, #tpu.memory_space<vmem>>, vector<1x8xi32>
    %c1_15 = arith.constant 1 : index
    %c0_16 = arith.constant 0 : index
    %28 = vector.load %arg7[%c1_15, %c0_16] : memref<2x8xi32, #tpu.memory_space<vmem>>, vector<1x8xi32>
    %29 = vector.broadcast %25 : vector<8x1xi32> to vector<8x8xi32>
    %30 = vector.broadcast %27 : vector<1x8xi32> to vector<8x8xi32>
    %31 = arith.subi %29, %30 : vector<8x8xi32>
    %32 = math.absi %31 : vector<8x8xi32>
    %33 = vector.broadcast %26 : vector<8x1xi32> to vector<8x8xi32>
    %34 = vector.broadcast %28 : vector<1x8xi32> to vector<8x8xi32>
    %35 = arith.cmpi eq, %33, %34 : vector<8x8xi32>
    %36 = tpu.iota {dimensions = array<i32: 0>} : vector<8x8xi32>
    %37 = tpu.iota {dimensions = array<i32: 1>} : vector<8x8xi32>
    %38 = arith.cmpi sgt, %3, %1 : i32
    %39 = arith.cmpi sgt, %37, %36 : vector<8x8xi32>
    %40 = vector.broadcast %38 : i1 to vector<8x8xi1>
    %41 = arith.ori %40, %39 : vector<8x8xi1>
    %42 = arith.andi %41, %35 : vector<8x8xi1>
    %43 = vector.broadcast %4 : i32 to vector<8x8xi32>
    %44 = arith.cmpi sle, %32, %43 : vector<8x8xi32>
    %45 = arith.andi %42, %44 : vector<8x8xi1>
    %46 = arith.extui %45 : vector<8x8xi1> to vector<8x8xi32>
    %47 = arith.sitofp %46 : vector<8x8xi32> to vector<8x8xf32>
    %48 = arith.sitofp %32 : vector<8x8xi32> to vector<8x8xf32>
    %cst_17 = arith.constant 1.000000e+00 : f32
    %49 = vector.broadcast %cst_17 : f32 to vector<8x8xf32>
    %50 = arith.addf %49, %48 : vector<8x8xf32>
    %51 = tpu.reciprocal %50 {approx = true} : vector<8x8xf32> -> vector<8x8xf32>
    %52 = arith.mulf %51, %24 : vector<8x8xf32>
    %53 = arith.mulf %47, %52 : vector<8x8xf32>
    %54 = vector.shape_cast %53 : vector<8x8xf32> to vector<1x8x8xf32>
    %cst_18 = arith.constant dense<0.000000e+00> : vector<1xf32>
    %55 = vector.multi_reduction <add>, %54, %cst_18 [1, 2] : vector<1x8x8xf32> to vector<1xf32>
    %56 = vector.shape_cast %55 : vector<1xf32> to vector<1x1x1xf32>
    %57 = vector.extract %56[0, 0, 0] : f32 from vector<1x1x1xf32>
    %58 = vector.broadcast %57 : f32 to vector<1x8x128xf32>
    %c0_19 = arith.constant 0 : index
    %c0_20 = arith.constant 0 : index
    %c0_21 = arith.constant 0 : index
    %59 = vector.load %arg8[%c0_19, %c0_20, %c0_21] : memref<1x8x128xf32, #tpu.memory_space<vmem>>, vector<1x8x128xf32>
    tpu.vector_store %arg8[%c0_19, %c0_20, %c0_21], %58 {strides = array<i32>} : memref<1x8x128xf32, #tpu.memory_space<vmem>>, vector<1x8x128xf32>,
    %60 = vector.shape_cast %47 : vector<8x8xf32> to vector<1x8x8xf32>
    %cst_22 = arith.constant dense<0.000000e+00> : vector<1xf32>
    %61 = vector.multi_reduction <add>, %60, %cst_22 [1, 2] : vector<1x8x8xf32> to vector<1xf32>
    %62 = vector.shape_cast %61 : vector<1xf32> to vector<1x1x1xf32>
    %63 = vector.extract %62[0, 0, 0] : f32 from vector<1x1x1xf32>
    %64 = vector.broadcast %63 : f32 to vector<1x8x128xf32>
    %c0_23 = arith.constant 0 : index
    %c0_24 = arith.constant 0 : index
    %c0_25 = arith.constant 0 : index
    %65 = vector.load %arg9[%c0_23, %c0_24, %c0_25] : memref<1x8x128xf32, #tpu.memory_space<vmem>>, vector<1x8x128xf32>
    tpu.vector_store %arg9[%c0_23, %c0_24, %c0_25], %64 {strides = array<i32>} : memref<1x8x128xf32, #tpu.memory_space<vmem>>, vector<1x8x128xf32>,
    return
  }
  func.func @transform_0(%arg0: i32, %arg1: memref<1xi32, #tpu.memory_space<smem>>, %arg2: memref<1xi32, #tpu.memory_space<smem>>, %arg3: memref<1xi32, #tpu.memory_space<smem>>) -> (i32, i32) {
    %0 = arith.index_cast %arg0 : i32 to index
    %1 = memref.load %arg1[%0] : memref<1xi32, #tpu.memory_space<smem>>
    %c0_i32 = arith.constant 0 : i32
    %c0_i32_0 = arith.constant 0 : i32
    return %1, %c0_i32 : i32, i32
  }
  func.func @transform_1(%arg0: i32, %arg1: memref<1xi32, #tpu.memory_space<smem>>, %arg2: memref<1xi32, #tpu.memory_space<smem>>, %arg3: memref<1xi32, #tpu.memory_space<smem>>) -> (i32, i32) {
    %0 = arith.index_cast %arg0 : i32 to index
    %1 = memref.load %arg2[%0] : memref<1xi32, #tpu.memory_space<smem>>
    %c0_i32 = arith.constant 0 : i32
    %c0_i32_0 = arith.constant 0 : i32
    return %1, %c0_i32 : i32, i32
  }
  func.func @transform_2(%arg0: i32, %arg1: memref<1xi32, #tpu.memory_space<smem>>, %arg2: memref<1xi32, #tpu.memory_space<smem>>, %arg3: memref<1xi32, #tpu.memory_space<smem>>) -> (i32, i32) {
    %0 = arith.index_cast %arg0 : i32 to index
    %1 = memref.load %arg1[%0] : memref<1xi32, #tpu.memory_space<smem>>
    %c0_i32 = arith.constant 0 : i32
    %c0_i32_0 = arith.constant 0 : i32
    return %1, %c0_i32 : i32, i32
  }
  func.func @transform_3(%arg0: i32, %arg1: memref<1xi32, #tpu.memory_space<smem>>, %arg2: memref<1xi32, #tpu.memory_space<smem>>, %arg3: memref<1xi32, #tpu.memory_space<smem>>) -> (i32, i32) {
    %0 = arith.index_cast %arg0 : i32 to index
    %1 = memref.load %arg2[%0] : memref<1xi32, #tpu.memory_space<smem>>
    %c0_i32 = arith.constant 0 : i32
    %c0_i32_0 = arith.constant 0 : i32
    return %c0_i32, %1 : i32, i32
  }
  func.func @transform_4(%arg0: i32, %arg1: memref<1xi32, #tpu.memory_space<smem>>, %arg2: memref<1xi32, #tpu.memory_space<smem>>, %arg3: memref<1xi32, #tpu.memory_space<smem>>) -> (i32, i32, i32) {
    %c0_i32 = arith.constant 0 : i32
    %c0_i32_0 = arith.constant 0 : i32
    %c0_i32_1 = arith.constant 0 : i32
    return %arg0, %c0_i32, %c0_i32_0 : i32, i32, i32
  }
  func.func @transform_5(%arg0: i32, %arg1: memref<1xi32, #tpu.memory_space<smem>>, %arg2: memref<1xi32, #tpu.memory_space<smem>>, %arg3: memref<1xi32, #tpu.memory_space<smem>>) -> (i32, i32, i32) {
    %c0_i32 = arith.constant 0 : i32
    %c0_i32_0 = arith.constant 0 : i32
    %c0_i32_1 = arith.constant 0 : i32
    return %arg0, %c0_i32, %c0_i32_0 : i32, i32, i32
  }
}

</mosaic_0001>

<llo_original>
// kernel: tpu_custom_call.1
$region0: #{tpu_custom_call.1}
  #allocation0 [shape = 'u32[]', space=smem, size = 0x4, offset = 0x4, fixed_abs, tag = 'smem constant byte address 0x4 - core index']
  #allocation1 [shape = 'u32[72,128]{1,0:T(1,128)}', space=vmem, size = 0x9000, scoped, tag = 'internal scratch']
  #allocation2 [shape = 's32[1]{0}', space=sflag, size = 0x4, scoped, tag = 'scoped memory for tpu_custom_call.1']
  #allocation3 [shape = 's32[1]{0:T(128)S(6)}', space=smem, size = 0x200, scoped, tag = 'prefetched SMEM operand 0']
  #allocation4 [shape = 's32[1]{0:T(128)S(6)}', space=smem, size = 0x200, scoped, tag = 'prefetched SMEM operand 1']
  #allocation5 [shape = 's32[1]{0:T(128)S(6)}', space=smem, size = 0x200, scoped, tag = 'prefetched SMEM operand 2']
  %s0 = inlined_call_operand.<no memory space> [shape: s32[1], index: 0, kind: input, shape index: {}]
  %s1 = inlined_call_operand.<no memory space> [shape: s32[1], index: 1, kind: input, shape index: {}]
  %s2 = inlined_call_operand.<no memory space> [shape: s32[1], index: 2, kind: input, shape index: {}]
  %s3 = inlined_call_operand.vmem [shape: f32[8,32], index: 3, kind: input, shape index: {}]
  %s4 = inlined_call_operand.hbm [shape: f32[8,32], index: 4, kind: input, shape index: {}]
  %s5 = inlined_call_operand.vmem [shape: s32[8,2], index: 5, kind: input, shape index: {}]
  %s6 = inlined_call_operand.vmem [shape: s32[2,8], index: 6, kind: input, shape index: {}]
  %s7 = inlined_call_operand.hbm [shape: f32[1,8,128], index: 7, kind: output, shape index: {0}]
  %s8 = inlined_call_operand.hbm [shape: f32[1,8,128], index: 8, kind: output, shape index: {1}]
  %9 = xla_tuple %s7, %s8
  %s10 = sld [smem:[#allocation0]]
  $region38: #{tpu_custom_call.1} parent=0
    _
  %s12 = ssub.s32 1, %s10
  %s13 = scalar_select 0, %s12, %s10
  %14 = sst [smem:[#allocation3]] %s0
  %15 = sst [smem:[#allocation4]] %s1
  %16 = sst [smem:[#allocation5]] %s2
  $region1: #{tpu_custom_call.1} parent=0
    #allocation6 [shape = 'u8[4096]{0}', space=vmem, size = 0x1000, scoped, tag = 'input window, operand 4, single buffered']
    #allocation7 [shape = 's32[1]{0}', space=sflag, size = 0x4, scoped, tag = 'scoped memory for tpu_custom_call.1']
    #allocation8 [shape = 's32[1]{0}', space=sflag, size = 0x4, scoped, tag = 'scoped memory for tpu_custom_call.1']
    #allocation9 [shape = 'u8[4096]{0}', space=vmem, size = 0x1000, scoped, tag = 'output window, operand 0, single buffered']
    #allocation10 [shape = 'u8[4096]{0}', space=vmem, size = 0x1000, scoped, tag = 'output window, operand 1, single buffered']
    #allocation11 [shape = 's32[1]{0}', space=sflag, size = 0x4, scoped, tag = 'scoped memory for tpu_custom_call.1']
    %17 = vsyncpa [#allocation7], 0
    %18 = vsyncpa [#allocation8], 0
    %19 = vsyncpa [#allocation11], 0
    // Predicated region
    $region2: #{tpu_custom_call.1} parent=1 // pred_check
      _
    $region3: #{tpu_custom_call.1} parent=1 // pred_check_branch
      %21 = sbr.rel (0) target = $region5
    $region4: #{tpu_custom_call.1} parent=1 // pred_region
      %s22 = sld [smem:[#allocation3]]
      %p23 = scmp.lt.s32.totalorder %s22, 0
      %s24 = scalar_select %p23, %s22, 0
      %s25 = smul.addr %s24, 8
      %s26 = scalar_lea.vmem %s3, %s25
      %s27 = sld [smem:[#allocation3]]
    $region5: #{tpu_custom_call.1} parent=1 // pred_fallthru
      _
    // Predicated region
    $region6: #{tpu_custom_call.1} parent=1 // pred_check
      _
    $region7: #{tpu_custom_call.1} parent=1 // pred_check_branch
      %29 = sbr.rel (0) target = $region9
    $region8: #{tpu_custom_call.1} parent=1 // pred_region
      %s30 = sld [smem:[#allocation4]]
      %32 = vsyncadd [#allocation7], 0
      %s33 = smul.addr %s30, 8
      %s34 = scalar_lea.hbm %s4, %s33
      %s36 = sshll.u32 %s34, 4
      %s37 = int_to_ptr.hbm [resolvable:$true] %s36
      %s38 = sshll.u32 [#allocation6], 4
      %s39 = int_to_ptr.vmem [resolvable:$true] %s38
      %41 = dma.hbm_to_vmem [thread:$0]  %s37, 128, %s39, [#allocation7]
    $region9: #{tpu_custom_call.1} parent=1 // pred_fallthru
      _
    // Predicated region
    $region10: #{tpu_custom_call.1} parent=1 // pred_check
      _
    $region11: #{tpu_custom_call.1} parent=1 // pred_check_branch
      %43 = sbr.rel (0) target = $region13
    $region12: #{tpu_custom_call.1} parent=1 // pred_region
      %s44 = sld [smem:[#allocation3]]
      %p45 = scmp.lt.s32.totalorder %s44, 0
      %s46 = scalar_select %p45, %s44, 0
      %s47 = smul.addr %s46, 8
      %s48 = scalar_lea.vmem %s5, %s47
      %s49 = sld [smem:[#allocation3]]
    $region13: #{tpu_custom_call.1} parent=1 // pred_fallthru
      _
    // Predicated region
    $region14: #{tpu_custom_call.1} parent=1 // pred_check
      _
    $region15: #{tpu_custom_call.1} parent=1 // pred_check_branch
      %51 = sbr.rel (0) target = $region17
    $region16: #{tpu_custom_call.1} parent=1 // pred_region
      %s52 = sld [smem:[#allocation4]]
      %p53 = scmp.lt.s32.totalorder %s52, 0
      %s54 = scalar_select %p53, %s52, 0
      %s55 = smul.addr %s54, 2
      %s56 = scalar_lea.vmem %s6, %s55
      %s57 = sld [smem:[#allocation4]]
    $region17: #{tpu_custom_call.1} parent=1 // pred_fallthru
      _
    // Predicated region
    $region18: #{tpu_custom_call.1} parent=1 // pred_check
      _
    $region19: #{tpu_custom_call.1} parent=1 // pred_check_branch
      %59 = sbr.rel (0) target = $region21
    $region20: #{tpu_custom_call.1} parent=1 // pred_region
      %61 = dma.done [#allocation7], 128
    $region21: #{tpu_custom_call.1} parent=1 // pred_fallthru
      _
    %s62 = sld [smem:[#allocation3]]
    %p63 = scmp.lt.s32.totalorder %s62, 0
    %s64 = scalar_select %p63, %s62, 0
    %s65 = smul.addr %s64, 8
    %s66 = scalar_lea.vmem %s3, %s65
    %s67 = sld [smem:[#allocation3]]
    %p68 = scmp.lt.s32.totalorder %s67, 0
    %s69 = scalar_select %p68, %s67, 0
    %s70 = smul.addr %s69, 8
    %s71 = scalar_lea.vmem %s5, %s70
    %s72 = sld [smem:[#allocation4]]
    %p73 = scmp.lt.s32.totalorder %s72, 0
    %s74 = scalar_select %p73, %s72, 0
    %s75 = smul.addr %s74, 2
    %s76 = scalar_lea.vmem %s6, %s75
    %s77 = sld [smem:[#allocation3]]
    %p78 = scmp.lt.s32.totalorder %s77, 0
    %s79 = scalar_select %p78, %s77, 0
    %s80 = smul.addr %s79, 8
    %s81 = scalar_lea.vmem %s3, %s80
    %s82 = sld [smem:[#allocation3]]
    %s83 = sld [smem:[#allocation4]]
    %s84 = sld [smem:[#allocation3]]
    %p85 = scmp.lt.s32.totalorder %s84, 0
    %s86 = scalar_select %p85, %s84, 0
    %s87 = smul.addr %s86, 8
    %s88 = scalar_lea.vmem %s5, %s87
    %s89 = sld [smem:[#allocation3]]
    %s90 = sld [smem:[#allocation4]]
    %p91 = scmp.lt.s32.totalorder %s90, 0
    %s92 = scalar_select %p91, %s90, 0
    %s93 = smul.addr %s92, 2
    %s94 = scalar_lea.vmem %s6, %s93
    %s95 = sld [smem:[#allocation4]]
    %s96 = sld [smem:[#allocation3]]
    %s97 = sld [smem:[#allocation4]]
    %s98 = sld [smem:[#allocation5]]
    %v99 = vld [vmem:[%s81] sm:$0xff]
    %v100 = vld [vmem:[#allocation6] sm:$0xff]
    %vm101 = vcmask 261120
    %v103 = vsel %vm101, %v99, 0
    %v106 = vsel %vm101, %v100, 0
    %108 = vmatpush.xpose.msra.mxu0 0.0
    %109 = vmatpush.xpose.msra.mxu0 0.0
    %110 = vmatpush.xpose.msra.mxu0 0.0
    %111 = vmatpush.xpose.msra.mxu0 0.0
    %112 = vmatpush.xpose.msra.mxu0 0.0
    %113 = vmatpush.xpose.msra.mxu0 0.0
    %114 = vmatpush.xpose.msra.mxu0 0.0
    %115 = vmatpush.xpose.msra.mxu0 0.0
    %116 = vmatpush.xpose.msra.mxu0 0.0
    %117 = vmatpush.xpose.msra.mxu0 0.0
    %118 = vmatpush.xpose.msra.mxu0 0.0
    %119 = vmatpush.xpose.msra.mxu0 0.0
    %120 = vmatpush.xpose.msra.mxu0 0.0
    %121 = vmatpush.xpose.msra.mxu0 0.0
    %122 = vmatpush.xpose.msra.mxu0 0.0
    %123 = vmatpush.xpose.msra.mxu0 %v106
    %124 = vmatmul.f32.gmra.mxu0 %v103
    %v125 = vpop.f32.mrf.mxu0
    %v126 = vadd.f32 0.0, %v125
    %127 = vdwg.mxu0
    %v128 = vmul.f32 %v99, %v99
    %v129 = vsel %vm101, %v128, 0.0
    %130 = vadd.xlane.f32.xlu0 %v129
    %v131 = vpop.xlane.xlu0 %130
    %v132 = vmul.f32 %v100, %v100
    %v134 = vsel %vm101, 1.0, 0
    %v137 = vsel %vm101, %v132, 0
    %139 = vmatpush.xpose.msra.mxu0 0.0
    %140 = vmatpush.xpose.msra.mxu0 0.0
    %141 = vmatpush.xpose.msra.mxu0 0.0
    %142 = vmatpush.xpose.msra.mxu0 0.0
    %143 = vmatpush.xpose.msra.mxu0 0.0
    %144 = vmatpush.xpose.msra.mxu0 0.0
    %145 = vmatpush.xpose.msra.mxu0 0.0
    %146 = vmatpush.xpose.msra.mxu0 0.0
    %147 = vmatpush.xpose.msra.mxu0 0.0
    %148 = vmatpush.xpose.msra.mxu0 0.0
    %149 = vmatpush.xpose.msra.mxu0 0.0
    %150 = vmatpush.xpose.msra.mxu0 0.0
    %151 = vmatpush.xpose.msra.mxu0 0.0
    %152 = vmatpush.xpose.msra.mxu0 0.0
    %153 = vmatpush.xpose.msra.mxu0 0.0
    %154 = vmatpush.xpose.msra.mxu0 %v137
    %155 = vmatmul.f32.gmra.mxu0 %v134
    %v156 = vpop.f32.mrf.mxu0
    %v157 = vadd.f32 0.0, %v156
    %158 = vdwg.mxu0
    %v159 = vperm.slane %v157, 0
    %v160 = vadd.f32 %v131, %v159
    %v161 = vmul.f32 %v126, 2.0
    %v162 = vsub.f32 %v160, %v161
    %v163 = vmax.f32 %v162, 0.0
    %v164 = vmul.f32 %v163, 0.03125
    %v165 = vld [vmem:[%s88] sm:$0xff]
    %v166 = vld [vmem:[%s94] sm:$0x1]
    %v167 = vld [vmem:[%s94 + $0x1] sm:$0x1]
    %168 = vset.pattern.permute.xlu0 0
    %169 = vperm.xlu0 %168, %v165
    %v170 = vpop.permute.xlu0 %169
    %v171 = vperm.slane %v166, 0
    %v172 = vsub.s32 %v170, %v171
    %vm173 = vcmp.lt.s32.totalorder %v172, 0
    %v174 = vsub.s32 0, %v172
    %v175 = vsel %vm173, %v174, %v172
    %176 = vset.pattern.permute.xlu0 1
    %177 = vperm.xlu0 %176, %v165
    %v178 = vpop.permute.xlu0 %177
    %v179 = vperm.slane %v167, 0
    %vm180 = vcmp.eq.s32.totalorder %v178, %v179
    %v181 = vlaneseq
    %v182 = vshrl.u32 %v181, 7
    %v183 = vlaneseq
    %v184 = vand.u32 %v183, 127
    %p185 = scmp.gt.s32.totalorder %s97, %s96
    %vm186 = vcmp.gt.s32.totalorder %v184, %v182
    %s187 = scalar_select %p185, 1, 0
    %v188 = vstv %s187
    %vm189 = vcmp.eq.s32.totalorder %v188, 1
    %vm190 = vmor %vm189, %vm186
    %vm191 = vmand %vm190, %vm180
    %v192 = vstv %s98
    %vm193 = vcmp.le.s32.totalorder %v175, %v192
    %vm194 = vmand %vm191, %vm193
    %v195 = vsel %vm194, 1, 0
    %v196 = vcvt.s32.f32 %v195
    %v197 = vcvt.s32.f32 %v175
    %v198 = vadd.f32 %v197, 1.0
    %v199 = vrcp.pop %v198
    %v200 = vmul.f32 %v199, %v164
    %v201 = vmul.f32 %v196, %v200
    %vm202 = vcmask 64512
    %v203 = vsel %vm202, %v201, 0.0
    %204 = vadd.xlane.f32.xlu0 %v203
    %v205 = vpop.xlane.xlu0 %204
    %v206 = vrot.slane %v205, 4
    %v207 = vadd.f32 %v205, %v206
    %v208 = vrot.slane %v207, 2
    %v209 = vadd.f32 %v207, %v208
    %v210 = vrot.slane %v209, 1
    %v211 = vadd.f32 %v209, %v210
    %s212 = vtos %v211
    %v213 = vstv %s212
    %214 = vst [vmem:[#allocation9] sm:$0xff] %v213
    %v215 = vsel %vm202, %v196, 0.0
    %216 = vadd.xlane.f32.xlu0 %v215
    %v217 = vpop.xlane.xlu0 %216
    %v218 = vrot.slane %v217, 4
    %v219 = vadd.f32 %v217, %v218
    %v220 = vrot.slane %v219, 2
    %v221 = vadd.f32 %v219, %v220
    %v222 = vrot.slane %v221, 1
    %v223 = vadd.f32 %v221, %v222
    %s224 = vtos %v223
    %v225 = vstv %s224
    %226 = vst [vmem:[#allocation10] sm:$0xff] %v225
    // Predicated region
    $region22: #{tpu_custom_call.1} parent=1 // pred_check
      _
    $region23: #{tpu_custom_call.1} parent=1 // pred_check_branch
      %228 = sbr.rel (0) target = $region25
    $region24: #{tpu_custom_call.1} parent=1 // pred_region
      %230 = vsyncadd [#allocation8], 0
      %s232 = sshll.u32 [#allocation9], 4
      %s233 = int_to_ptr.vmem [resolvable:$true] %s232
      %s234 = sshll.u32 %s7, 4
      %s235 = int_to_ptr.hbm [resolvable:$true] %s234
      %237 = dma.vmem_to_hbm [thread:$0]  %s233, 128, %s235, [#allocation8]
    $region25: #{tpu_custom_call.1} parent=1 // pred_fallthru
      _
    // Predicated region
    $region26: #{tpu_custom_call.1} parent=1 // pred_check
      _
    $region27: #{tpu_custom_call.1} parent=1 // pred_check_branch
      %239 = sbr.rel (0) target = $region29
    $region28: #{tpu_custom_call.1} parent=1 // pred_region
      %241 = vsyncadd [#allocation11], 0
      %s243 = sshll.u32 [#allocation10], 4
      %s244 = int_to_ptr.vmem [resolvable:$true] %s243
      %s245 = sshll.u32 %s8, 4
      %s246 = int_to_ptr.hbm [resolvable:$true] %s245
      %248 = dma.vmem_to_hbm [thread:$0]  %s244, 128, %s246, [#allocation11]
    $region29: #{tpu_custom_call.1} parent=1 // pred_fallthru
      _
    // Predicated region
    $region30: #{tpu_custom_call.1} parent=1 // pred_check
      _
    $region31: #{tpu_custom_call.1} parent=1 // pred_check_branch
      %250 = sbr.rel (0) target = $region33
    $region32: #{tpu_custom_call.1} parent=1 // pred_region
      %252 = dma.done [#allocation8], 128
    $region33: #{tpu_custom_call.1} parent=1 // pred_fallthru
      _
    // Predicated region
    $region34: #{tpu_custom_call.1} parent=1 // pred_check
      _
    $region35: #{tpu_custom_call.1} parent=1 // pred_check_branch
      %254 = sbr.rel (0) target = $region37
    $region36: #{tpu_custom_call.1} parent=1 // pred_region
      %256 = dma.done [#allocation11], 128
    $region37: #{tpu_custom_call.1} parent=1 // pred_fallthru
      _
    %257 = vsyncpa [#allocation7], 1
    %258 = vsyncpa [#allocation8], 1
    %259 = vsyncpa [#allocation11], 1

</llo_original>
